<compile_context>
chip_gen: v7x
topology: tpu7x:2x2x1
jax: 0.10.0
libtpu: 0.0.40
codegen_flags: <defaults>
</compile_context>

<pallas_src>
import math
import functools

import jax
import jax.numpy as jnp
from jax.experimental import pallas as pl
from jax.experimental.pallas import tpu as pltpu


# --------------------------------------------------------------------------- #
# Kernels (operate on lane-dense 2-D views: x/out/bits = (TS, B*D), pe = (TS, D))
# --------------------------------------------------------------------------- #
def _posenc_kernel(x_ref, pe_ref, o_ref, *, batch):
    """y = x + pe (pe broadcast over the batch, which is folded into lanes)."""
    pe_b = jnp.tile(pe_ref[...], (1, batch))          # (TS, D) -> (TS, B*D)
    o_ref[...] = (x_ref[...] + pe_b).astype(o_ref.dtype)


def _posenc_dropout_kernel(x_ref, pe_ref, bits_ref, o_ref, *,
                           batch, threshold, inv_keep):
    """y = dropout(x + pe) with integer-threshold masking on raw uint32 bits."""
    pe_b = jnp.tile(pe_ref[...], (1, batch))          # (TS, D) -> (TS, B*D)
    y = x_ref[...] + pe_b
    keep = bits_ref[...] >= jnp.uint32(threshold)     # P(keep) = 1 - p
    y = jnp.where(keep, y * jnp.asarray(inv_keep, dtype=y.dtype),
                  jnp.zeros_like(y))
    o_ref[...] = y.astype(o_ref.dtype)


# --------------------------------------------------------------------------- #
# pe table (identical to the PyTorch __init__)
# --------------------------------------------------------------------------- #
def make_positional_encoding_table(d_model: int, max_len: int) -> jax.Array:
    position = jnp.arange(max_len, dtype=jnp.float32)[:, None]            # (L, 1)
    div_term = jnp.exp(
        jnp.arange(0, d_model, 2, dtype=jnp.float32) * (-math.log(10000.0) / d_model)
    )                                                                      # (D/2,)
    pe = jnp.zeros((max_len, 1, d_model), dtype=jnp.float32)
    pe = pe.at[:, 0, 0::2].set(jnp.sin(position * div_term))
    pe = pe.at[:, 0, 1::2].set(jnp.cos(position * div_term))
    return pe


# --------------------------------------------------------------------------- #
# Tiling helper: ~1 MiB blocks, sublane-aligned (multiple of 8) divisors of S
# --------------------------------------------------------------------------- #
def _choose_tile_seq(seq_len: int, row_bytes: int, target_bytes: int = 1 << 20) -> int:
    if seq_len * row_bytes <= 2 * target_bytes:
        return seq_len                                  # small: one block
    max_rows = max(8, target_bytes // max(row_bytes, 1))
    best = None
    t = 8
    while t <= min(seq_len, max_rows):
        if seq_len % t == 0:
            best = t
        t += 8
    return best if best is not None else seq_len        # fallback: whole array


# --------------------------------------------------------------------------- #
# Wrapper
# --------------------------------------------------------------------------- #
def positional_encoding(
    x: jax.Array,
    pe: jax.Array,
    *,
    dropout_p: float = 0.1,
    training: bool = False,
    seed: int = 0,
    tile_seq: int | None = None,
) -> jax.Array:
    """Pallas forward pass: (x + pe) followed by (optional) inverted dropout."""
    S, B, D = x.shape
    pe = jnp.asarray(pe)
    if pe.ndim == 3:
        assert pe.shape == (S, 1, D), (
            "Original module requires seq_len == max_len (pe is not sliced)."
        )
        pe2 = pe.reshape(S, D)
    else:
        assert pe.shape == (S, D)
        pe2 = pe
    # Keep the add (and dropout) in x's dtype: bf16 inputs stay bf16 end-to-end.
    pe2 = pe2.astype(x.dtype)

    BD = B * D
    x2 = x.reshape(S, BD)          # free row-major collapse -> lane-dense last axis

    row_bytes = BD * x2.dtype.itemsize
    if tile_seq is None:
        tile_seq = _choose_tile_seq(S, row_bytes)
    assert S % tile_seq == 0 and (tile_seq == S or tile_seq % 8 == 0), (
        "tile_seq must divide S and be a multiple of 8 (or equal S)."
    )
    grid = (S // tile_seq,)

    x_spec = pl.BlockSpec((tile_seq, BD), lambda i: (i, 0))
    pe_spec = pl.BlockSpec((tile_seq, D), lambda i: (i, 0))
    out_spec = pl.BlockSpec((tile_seq, BD), lambda i: (i, 0))

    compiler_params = pltpu.CompilerParams(
        # Seq tiles are independent (no accumulator) -> shard over v7x's 2 TCs.
        dimension_semantics=("parallel",),
    )

    use_dropout = training and dropout_p > 0.0
    if use_dropout:
        # P(drop) = threshold / 2^32  ==  dropout_p
        threshold = min(int(round(dropout_p * 2.0 ** 32)), (1 << 32) - 1)
        inv_keep = 1.0 / (1.0 - dropout_p)
        # Bits depend only on (seed, full array shape) -> tiling-independent mask.
        bits = jax.random.bits(jax.random.PRNGKey(seed), (S, BD), dtype=jnp.uint32)
        kernel = functools.partial(
            _posenc_dropout_kernel, batch=B, threshold=threshold, inv_keep=inv_keep
        )
        in_specs = [x_spec, pe_spec,
                    pl.BlockSpec((tile_seq, BD), lambda i: (i, 0))]
        args = (x2, pe2, bits)
    else:
        kernel = functools.partial(_posenc_kernel, batch=B)
        in_specs = [x_spec, pe_spec]
        args = (x2, pe2)

    out2 = pl.pallas_call(
        kernel,
        out_shape=jax.ShapeDtypeStruct((S, BD), x.dtype),
        grid=grid,
        in_specs=in_specs,
        out_specs=out_spec,
        compiler_params=compiler_params,
    )(*args)
    return out2.reshape(S, B, D)


# --------------------------------------------------------------------------- #
# Demo / correctness checks
# --------------------------------------------------------------------------- #
if __name__ == "__main__":
    # Small shapes consistent with the module: seq == max_len == 8, batch 2, d_model 32
    SEQ, BATCH, D_MODEL = 8, 2, 32
    DROPOUT_P = 0.1

    key = jax.random.PRNGKey(0)
    x = jax.random.normal(key, (SEQ, BATCH, D_MODEL), dtype=jnp.float32)
    pe = make_positional_encoding_table(D_MODEL, max_len=SEQ)
    ref = x + pe  # broadcast over batch, same as torch

    # --- eval mode: dropout is identity -----------------------------------
    y_eval = jax.block_until_ready(
        positional_encoding(x, pe, dropout_p=DROPOUT_P, training=False)
    )
    assert jnp.allclose(y_eval, ref, atol=1e-6, rtol=1e-6), "eval-mode mismatch"

    # --- training mode: exact check against the same externally drawn bits --
    SEED = 1234
    y_train = jax.block_until_ready(
        positional_encoding(x, pe, dropout_p=DROPOUT_P, training=True, seed=SEED)
    )
    bits = jax.random.bits(jax.random.PRNGKey(SEED), (SEQ, BATCH * D_MODEL),
                           dtype=jnp.uint32)
    threshold = min(int(round(DROPOUT_P * 2.0 ** 32)), (1 << 32) - 1)
    keep = (bits >= jnp.uint32(threshold)).reshape(SEQ, BATCH, D_MODEL)
    ref_train = jnp.where(keep, ref / (1.0 - DROPOUT_P), 0.0)
    assert jnp.allclose(y_train, ref_train, atol=1e-5, rtol=1e-5), (
        "training-mode dropout mismatch"
    )

    # --- larger, lane-dense, multi-tile case (exercises the pipelined grid) --
    S2, B2, D2 = 256, 4, 128            # B*D = 512 lanes, 4 grid steps
    P2 = 0.25
    x_big = jax.random.normal(jax.random.PRNGKey(1), (S2, B2, D2), dtype=jnp.float32)
    pe_big = make_positional_encoding_table(D2, max_len=S2)
    y_big = jax.block_until_ready(
        positional_encoding(x_big, pe_big, dropout_p=P2, training=True,
                            seed=7, tile_seq=64)
    )
    bits_big = jax.random.bits(jax.random.PRNGKey(7), (S2, B2 * D2), dtype=jnp.uint32)
    thr_big = min(int(round(P2 * 2.0 ** 32)), (1 << 32) - 1)
    keep_big = (bits_big >= jnp.uint32(thr_big)).reshape(S2, B2, D2)
    ref_big = jnp.where(keep_big, (x_big + pe_big) / (1.0 - P2), 0.0)
    assert jnp.allclose(y_big, ref_big, atol=1e-5, rtol=1e-5), "multi-tile mismatch"

    print("KERNEL_OK")
</pallas_src>

<mosaic_0001>
module attributes {stable_mosaic.version = 11 : i64} {
  func.func @_posenc_kernel(%arg0: i32, %arg1: memref<8x64xf32, #tpu.memory_space<vmem>>, %arg2: memref<8x32xf32, #tpu.memory_space<vmem>>, %arg3: memref<8x64xf32, #tpu.memory_space<vmem>>) attributes {dimension_semantics = [#tpu.dimension_semantics<parallel>], iteration_bounds = array<i64: 1>, scalar_prefetch = 0 : i64, scratch_operands = 0 : i64, tpu.core_type = #tpu.core_type<tc>, window_params = [{transform_indices = @transform_0, window_bounds = array<i64: 8, 64>}, {transform_indices = @transform_1, window_bounds = array<i64: 8, 32>}, {transform_indices = @transform_2, window_bounds = array<i64: 8, 64>}]} {
    %c0 = arith.constant 0 : index
    %c0_0 = arith.constant 0 : index
    %0 = vector.load %arg2[%c0, %c0_0] : memref<8x32xf32, #tpu.memory_space<vmem>>, vector<8x32xf32>
    %1 = tpu.concatenate %0, %0 in 1 : vector<8x32xf32>, vector<8x32xf32> -> vector<8x64xf32>
    %c0_1 = arith.constant 0 : index
    %c0_2 = arith.constant 0 : index
    %2 = vector.load %arg1[%c0_1, %c0_2] : memref<8x64xf32, #tpu.memory_space<vmem>>, vector<8x64xf32>
    %3 = arith.addf %2, %1 : vector<8x64xf32>
    %c0_3 = arith.constant 0 : index
    %c0_4 = arith.constant 0 : index
    %4 = vector.load %arg3[%c0_3, %c0_4] : memref<8x64xf32, #tpu.memory_space<vmem>>, vector<8x64xf32>
    tpu.vector_store %arg3[%c0_3, %c0_4], %3 {strides = array<i32>} : memref<8x64xf32, #tpu.memory_space<vmem>>, vector<8x64xf32>,
    return
  }
  func.func @transform_0(%arg0: i32) -> (i32, i32) {
    %c0_i32 = arith.constant 0 : i32
    %c0_i32_0 = arith.constant 0 : i32
    return %arg0, %c0_i32 : i32, i32
  }
  func.func @transform_1(%arg0: i32) -> (i32, i32) {
    %c0_i32 = arith.constant 0 : i32
    %c0_i32_0 = arith.constant 0 : i32
    return %arg0, %c0_i32 : i32, i32
  }
  func.func @transform_2(%arg0: i32) -> (i32, i32) {
    %c0_i32 = arith.constant 0 : i32
    %c0_i32_0 = arith.constant 0 : i32
    return %arg0, %c0_i32 : i32, i32
  }
}

</mosaic_0001>

<llo_original>
// kernel: tpu_custom_call.1
$region0: #{tpu_custom_call.1}
  #allocation0 [shape = 'u32[]', space=smem, size = 0x4, offset = 0x4, fixed_abs, tag = 'smem constant byte address 0x4 - core index']
  #allocation1 [shape = 'u32[144,128]{1,0:T(1,128)}', space=vmem, size = 0x12000, scoped, tag = 'internal scratch']
  %s0 = inlined_call_operand.hbm [shape: f32[8,64], index: 0, kind: input, shape index: {}]
  %s1 = inlined_call_operand.hbm [shape: f32[8,32], index: 1, kind: input, shape index: {}]
  %s2 = inlined_call_operand.hbm [shape: f32[8,64], index: 2, kind: output, shape index: {}]
  %s3 = sld [smem:[#allocation0]]
  $region26: #{tpu_custom_call.1} parent=0
    _
  %s5 = ssub.s32 1, %s3
  %s6 = scalar_select 0, %s5, %s3
  $region1: #{tpu_custom_call.1} parent=0
    #allocation2 [shape = 'u8[4096]{0}', space=vmem, size = 0x1000, scoped, tag = 'input window, operand 0, single buffered']
    #allocation3 [shape = 's32[1]{0}', space=sflag, size = 0x4, scoped, tag = 'scoped memory for tpu_custom_call.1']
    #allocation4 [shape = 's32[1]{0}', space=sflag, size = 0x4, scoped, tag = 'scoped memory for tpu_custom_call.1']
    #allocation5 [shape = 'u8[4096]{0}', space=vmem, size = 0x1000, scoped, tag = 'input window, operand 1, single buffered']
    #allocation6 [shape = 's32[1]{0}', space=sflag, size = 0x4, scoped, tag = 'scoped memory for tpu_custom_call.1']
    #allocation7 [shape = 'u8[4096]{0}', space=vmem, size = 0x1000, scoped, tag = 'output window, operand 0, single buffered']
    %7 = vsyncpa [#allocation3], 0
    %8 = vsyncpa [#allocation6], 0
    %9 = vsyncpa [#allocation4], 0
    // Predicated region
    $region2: #{tpu_custom_call.1} parent=1 // pred_check
      _
    $region3: #{tpu_custom_call.1} parent=1 // pred_check_branch
      %11 = sbr.rel (0) target = $region5
    $region4: #{tpu_custom_call.1} parent=1 // pred_region
      %s13 = ssub.s32 128, 128
      %14 = vsyncadd [#allocation3], %s13
      %s16 = sshll.u32 [#allocation2], 4
      %s17 = int_to_ptr.vmem [resolvable:$true] %s16
      %19 = dma.hbm_to_vmem [thread:$0]  %s0, 128, %s17, [#allocation3]
    $region5: #{tpu_custom_call.1} parent=1 // pred_fallthru
      _
    // Predicated region
    $region6: #{tpu_custom_call.1} parent=1 // pred_check
      _
    $region7: #{tpu_custom_call.1} parent=1 // pred_check_branch
      %21 = sbr.rel (0) target = $region9
    $region8: #{tpu_custom_call.1} parent=1 // pred_region
      %s23 = ssub.s32 128, 128
      %24 = vsyncadd [#allocation6], %s23
      %s26 = sshll.u32 [#allocation5], 4
      %s27 = int_to_ptr.vmem [resolvable:$true] %s26
      %29 = dma.hbm_to_vmem [thread:$0]  %s1, 128, %s27, [#allocation6]
    $region9: #{tpu_custom_call.1} parent=1 // pred_fallthru
      _
    // Predicated region
    $region10: #{tpu_custom_call.1} parent=1 // pred_check
      _
    $region11: #{tpu_custom_call.1} parent=1 // pred_check_branch
      %31 = sbr.rel (0) target = $region13
    $region12: #{tpu_custom_call.1} parent=1 // pred_region
      %32 = dma.done [#allocation3], 128
    $region13: #{tpu_custom_call.1} parent=1 // pred_fallthru
      _
    // Predicated region
    $region14: #{tpu_custom_call.1} parent=1 // pred_check
      _
    $region15: #{tpu_custom_call.1} parent=1 // pred_check_branch
      %34 = sbr.rel (0) target = $region17
    $region16: #{tpu_custom_call.1} parent=1 // pred_region
      %35 = dma.done [#allocation6], 128
    $region17: #{tpu_custom_call.1} parent=1 // pred_fallthru
      _
    %v36 = vld [vmem:[#allocation5] sm:$0xff]
    %38 = vrot.lane.b32.xlu0 %v36, 32
    %v39 = vpop.permute.xlu0 %38
    %vm41 = vcmask 261120
    %v42 = vsel %vm41, %v36, %v39
    %v43 = vld [vmem:[#allocation2] sm:$0xff]
    %v44 = vadd.f32 %v43, %v42
    %vm45 = vcmask 523264
    %46 = vst.msk [vmem:[#allocation7] sm:$0xff] %vm45, %v44
    // Predicated region
    $region18: #{tpu_custom_call.1} parent=1 // pred_check
      _
    $region19: #{tpu_custom_call.1} parent=1 // pred_check_branch
      %48 = sbr.rel (0) target = $region21
    $region20: #{tpu_custom_call.1} parent=1 // pred_region
      %s50 = ssub.s32 128, 128
      %51 = vsyncadd [#allocation4], %s50
      %s53 = sshll.u32 [#allocation7], 4
      %s54 = int_to_ptr.vmem [resolvable:$true] %s53
      %56 = dma.vmem_to_hbm [thread:$0]  %s54, 128, %s2, [#allocation4]
    $region21: #{tpu_custom_call.1} parent=1 // pred_fallthru
      _
    // Predicated region
    $region22: #{tpu_custom_call.1} parent=1 // pred_check
      _
    $region23: #{tpu_custom_call.1} parent=1 // pred_check_branch
      %58 = sbr.rel (0) target = $region25
    $region24: #{tpu_custom_call.1} parent=1 // pred_region
      %59 = dma.done [#allocation4], 128
    $region25: #{tpu_custom_call.1} parent=1 // pred_fallthru
      _
    %60 = vsyncpa [#allocation3], 1
    %61 = vsyncpa [#allocation6], 1
    %62 = vsyncpa [#allocation4], 1

</llo_original>
